<compile_context>
chip_gen: v7x
topology: tpu7x:2x2x1
jax: 0.10.0
libtpu: 0.0.40
codegen_flags: <defaults>
</compile_context>

<pallas_src>
import jax
import jax.numpy as jnp
from jax.experimental import pallas as pl
from jax.experimental.pallas import tpu as pltpu

_VMEM_LIMIT_BYTES = 48 << 20  # safe on v5e/v6e (128 MiB phys) and v7x (64 MiB phys)
_SMALL_PROBLEM_VMEM_BUDGET = 12 << 20  # conservative fast-path budget (incl. buffering)


def _round_up(x, m):
    return ((x + m - 1) // m) * m


def _mm_cost(M, N, K, itemsize):
    return pl.CostEstimate(
        flops=2 * M * N * K,
        transcendentals=0,
        bytes_accessed=(M * K + K * N + M * N) * itemsize,
    )


# ---------------------------------------------------------------------------
# Fast path: operands fit comfortably in VMEM.  No K grid axis, no accumulator
# scratch, one dot per grid step.  Grid runs over M only so that 2-TC chips
# (v7x) still get >= 2 parallel blocks while output lane-width stays = N.
# ---------------------------------------------------------------------------
def _matmul_small_kernel(a_ref, b_ref, o_ref):
    o_ref[...] = jnp.dot(
        a_ref[...], b_ref[...], preferred_element_type=jnp.float32
    ).astype(o_ref.dtype)


def _matmul_small(a, b):
    M, K = a.shape
    _, N = b.shape
    # Split M into 2 parallel blocks when alignment allows (second TensorCore
    # on v7x); otherwise single invocation.
    nb = 2 if (M >= 16 and M % 16 == 0) else 1
    tm = M // nb
    itemsize = jnp.dtype(a.dtype).itemsize
    return pl.pallas_call(
        _matmul_small_kernel,
        out_shape=jax.ShapeDtypeStruct((M, N), a.dtype),
        grid_spec=pltpu.PrefetchScalarGridSpec(
            num_scalar_prefetch=0,
            grid=(nb,),
            in_specs=[
                pl.BlockSpec((tm, K), lambda i: (i, 0)),
                pl.BlockSpec((K, N), lambda i: (0, 0)),
            ],
            out_specs=pl.BlockSpec((tm, N), lambda i: (i, 0)),
        ),
        compiler_params=pltpu.CompilerParams(
            dimension_semantics=("parallel",),
            vmem_limit_bytes=_VMEM_LIMIT_BYTES,
        ),
        cost_estimate=_mm_cost(M, N, K, itemsize),
    )(a, b)


# ---------------------------------------------------------------------------
# General path: tiled MXU matmul, f32 accumulator scratch, K innermost.
# ---------------------------------------------------------------------------
def _matmul_kernel(a_ref, b_ref, o_ref, acc_ref):
    k = pl.program_id(2)

    @pl.when(k == 0)
    def _():
        acc_ref[...] = jnp.zeros_like(acc_ref)

    acc_ref[...] += jnp.dot(
        a_ref[...], b_ref[...], preferred_element_type=jnp.float32
    )

    @pl.when(k == pl.num_programs(2) - 1)
    def _():
        o_ref[...] = acc_ref[...].astype(o_ref.dtype)


def _matmul_tiled(a, b, tm, tn, tk):
    M, K = a.shape
    _, N = b.shape
    out_dtype = a.dtype
    itemsize = jnp.dtype(a.dtype).itemsize

    # Zero-pad to tile multiples (zeros along K contribute nothing to the sum).
    Mp, Np, Kp = _round_up(M, tm), _round_up(N, tn), _round_up(K, tk)
    if (Mp, Kp) != (M, K):
        a = jnp.pad(a, ((0, Mp - M), (0, Kp - K)))
    if (Kp, Np) != (K, N):
        b = jnp.pad(b, ((0, Kp - K), (0, Np - N)))

    grid = (Mp // tm, Np // tn, Kp // tk)

    out = pl.pallas_call(
        _matmul_kernel,
        out_shape=jax.ShapeDtypeStruct((Mp, Np), out_dtype),
        grid_spec=pltpu.PrefetchScalarGridSpec(
            num_scalar_prefetch=0,
            grid=grid,
            in_specs=[
                pl.BlockSpec((tm, tk), lambda i, j, k: (i, k)),
                pl.BlockSpec((tk, tn), lambda i, j, k: (k, j)),
            ],
            out_specs=pl.BlockSpec((tm, tn), lambda i, j, k: (i, j)),
            scratch_shapes=[pltpu.VMEM((tm, tn), jnp.float32)],
        ),
        compiler_params=pltpu.CompilerParams(
            dimension_semantics=("parallel", "parallel", "arbitrary"),
            vmem_limit_bytes=_VMEM_LIMIT_BYTES,
        ),
        cost_estimate=_mm_cost(Mp, Np, Kp, itemsize),
    )(a, b)

    if (Mp, Np) != (M, N):
        out = out[:M, :N]
    return out


def single_op_matmul(a: jax.Array, b: jax.Array, *, tm=None, tn=None, tk=None):
    """Pallas equivalent of SingleOpModel(torch.matmul, {}).forward(a, b)."""
    M, K = a.shape
    K2, N = b.shape
    assert K == K2, "inner dims must match"

    itemsize = jnp.dtype(a.dtype).itemsize
    operand_bytes = (M * K + K * N + M * N) * itemsize
    if (
        tm is None
        and tn is None
        and tk is None
        and 4 * operand_bytes <= _SMALL_PROBLEM_VMEM_BUDGET
    ):
        return _matmul_small(a, b)

    # Large default tiles: amortize grid-step overhead, fill the 256-wide MXU
    # on v6e/v7x; capped to the (padded) problem so small dims don't over-pad.
    tm = tm if tm is not None else min(256, _round_up(M, 8))
    tn = tn if tn is not None else min(256, _round_up(N, 128))
    tk = tk if tk is not None else min(512, _round_up(K, 128))
    # TODO(synk): optional bf16 operand cast (f32 accumulate) for v6e/v7x
    # throughput -- left off so exact-f32 tolerances hold.
    return _matmul_tiled(a, b, tm, tn, tk)


if __name__ == "__main__":
    key = jax.random.PRNGKey(0)
    ka, kb, kc, kd = jax.random.split(key, 4)

    # 1) Small, VMEM-resident shape (exercises the fast path).
    M, K, N = 128, 256, 128
    a = jax.random.normal(ka, (M, K), dtype=jnp.float32)
    b = jax.random.normal(kb, (K, N), dtype=jnp.float32)
    out = jax.block_until_ready(single_op_matmul(a, b))
    ref = jnp.dot(a, b, preferred_element_type=jnp.float32)
    assert out.shape == (M, N) and out.dtype == a.dtype
    assert jnp.allclose(out, ref, atol=1e-4, rtol=1e-4), "small-path mismatch"

    # 2) Non-tile-aligned shape forced through the tiled/padded path.
    M2, K2, N2 = 384, 640, 300
    a2 = jax.random.normal(kc, (M2, K2), dtype=jnp.float32)
    b2 = jax.random.normal(kd, (K2, N2), dtype=jnp.float32)
    out2 = jax.block_until_ready(single_op_matmul(a2, b2, tm=256, tn=256, tk=512))
    ref2 = jnp.dot(a2, b2, preferred_element_type=jnp.float32)
    assert out2.shape == (M2, N2)
    assert jnp.allclose(out2, ref2, atol=1e-3, rtol=1e-3), "tiled-path mismatch"

    print("KERNEL_OK")
</pallas_src>

<mosaic_0001>
module attributes {stable_mosaic.version = 11 : i64} {
  func.func @_matmul_small_kernel(%arg0: i32, %arg1: memref<64x256xf32, #tpu.memory_space<vmem>>, %arg2: memref<256x128xf32, #tpu.memory_space<vmem>>, %arg3: memref<64x128xf32, #tpu.memory_space<vmem>>) attributes {dimension_semantics = [#tpu.dimension_semantics<parallel>], iteration_bounds = array<i64: 2>, scalar_prefetch = 0 : i64, scratch_operands = 0 : i64, tpu.core_type = #tpu.core_type<tc>, window_params = [{transform_indices = @transform_0, window_bounds = array<i64: 64, 256>}, {pipeline_mode = #tpu.pipeline_mode<synchronous>, transform_indices = @transform_1, window_bounds = array<i64: 256, 128>}, {transform_indices = @transform_2, window_bounds = array<i64: 64, 128>}]} {
    %c0 = arith.constant 0 : index
    %c0_0 = arith.constant 0 : index
    %0 = vector.load %arg1[%c0, %c0_0] : memref<64x256xf32, #tpu.memory_space<vmem>>, vector<64x256xf32>
    %c0_1 = arith.constant 0 : index
    %c0_2 = arith.constant 0 : index
    %1 = vector.load %arg2[%c0_1, %c0_2] : memref<256x128xf32, #tpu.memory_space<vmem>>, vector<256x128xf32>
    %cst = arith.constant dense<0.000000e+00> : vector<64x128xf32>
    %2 = tpu.matmul %0, %1, %cst {dimension_numbers = #tpu.dot_dimension_numbers<[1], [0], [0], [1], [0, 0, 1, 1], [], []>} : vector<64x256xf32>, vector<256x128xf32>, vector<64x128xf32> -> vector<64x128xf32>
    %c0_3 = arith.constant 0 : index
    %c0_4 = arith.constant 0 : index
    %3 = vector.load %arg3[%c0_3, %c0_4] : memref<64x128xf32, #tpu.memory_space<vmem>>, vector<64x128xf32>
    tpu.vector_store %arg3[%c0_3, %c0_4], %2 {strides = array<i32>} : memref<64x128xf32, #tpu.memory_space<vmem>>, vector<64x128xf32>,
    return
  }
  func.func @transform_0(%arg0: i32) -> (i32, i32) {
    %c0_i32 = arith.constant 0 : i32
    %c0_i32_0 = arith.constant 0 : i32
    return %arg0, %c0_i32 : i32, i32
  }
  func.func @transform_1(%arg0: i32) -> (i32, i32) {
    %c0_i32 = arith.constant 0 : i32
    %c0_i32_0 = arith.constant 0 : i32
    %c0_i32_1 = arith.constant 0 : i32
    return %c0_i32, %c0_i32_0 : i32, i32
  }
  func.func @transform_2(%arg0: i32) -> (i32, i32) {
    %c0_i32 = arith.constant 0 : i32
    %c0_i32_0 = arith.constant 0 : i32
    return %arg0, %c0_i32 : i32, i32
  }
}

</mosaic_0001>

<llo_original>
// kernel: tpu_custom_call.1
$region0: #{tpu_custom_call.1}
  #allocation0 [shape = 'u32[]', space=smem, size = 0x4, offset = 0x4, fixed_abs, tag = 'smem constant byte address 0x4 - core index']
  #allocation1 [shape = 'u32[144,128]{1,0:T(1,128)}', space=vmem, size = 0x12000, scoped, tag = 'internal scratch']
  %s0 = inlined_call_operand.hbm [shape: f32[128,256], index: 0, kind: input, shape index: {}]
  %s1 = inlined_call_operand.hbm [shape: f32[256,128], index: 1, kind: input, shape index: {}]
  %s2 = inlined_call_operand.hbm [shape: f32[128,128], index: 2, kind: output, shape index: {}]
  %s3 = sld [smem:[#allocation0]]
  $region49: #{tpu_custom_call.1} parent=0
    _
  %s5 = ssub.s32 1, %s3
  %s6 = scalar_select 0, %s5, %s3
  $region1: #{tpu_custom_call.1} parent=0
    #allocation2 [shape = 'u8[131072]{0}', space=vmem, size = 0x20000, scoped, tag = 'input window, operand 0']
    #allocation3 [shape = 's32[2]{0}', space=sflag, size = 0x8, scoped, tag = 'scoped memory for tpu_custom_call.1']
    #allocation4 [shape = 's32[2]{0}', space=sflag, size = 0x8, scoped, tag = 'scoped memory for tpu_custom_call.1']
    #allocation5 [shape = 'u8[131072]{0}', space=vmem, size = 0x20000, scoped, tag = 'input window, operand 1, single buffered']
    #allocation6 [shape = 's32[1]{0}', space=sflag, size = 0x4, scoped, tag = 'scoped memory for tpu_custom_call.1']
    #allocation7 [shape = 'u8[65536]{0}', space=vmem, size = 0x10000, scoped, tag = 'output window, operand 0']
    %7 = vsyncpa [#allocation3], 0
    %s8 = scalar_lea.sflag [#allocation3], 1
    %9 = vsyncpa %s8, 0
    %10 = vsyncpa [#allocation6], 0
    %11 = vsyncpa [#allocation4], 0
    %s12 = scalar_lea.sflag [#allocation4], 1
    %13 = vsyncpa %s12, 0
    loop: start=0, step=1, limit=4
    $region2: #{tpu_custom_call.1} parent=1 // loop_pre_header
      _
    $region3: #{tpu_custom_call.1} parent=1 // loop_header
      %s15 = sphi 0, %s19
      %p16 = scmp.ge.s32.totalorder %s15, 4
      %s25 = sphi 0, %s27
      %s28 = sphi 0, %s25
      %s29 = sphi 0, %s28
      %s45 = sphi 0, %s29
      %s49 = sphi 0, %s49
      %s51 = sphi 0, %s49
      %s52 = sphi 0, %s51
      %s66 = sphi 0, %s52
      %s72 = sphi 0, %s74
      %s75 = sphi 0, %s72
      %s76 = sphi 0, %s75
      %s92 = sphi 0, %s76
    $region4: #{tpu_custom_call.1} parent=1 // loop_header_branch
      %18 = sbr.rel (%p16) target = $region8
    $region5: #{tpu_custom_call.1} parent=1 // loop_body
      %s20 = ssub.s32 %s15, 1
      %s21 = ssub.s32 %s15, 2
      %s22 = sadd.s32 %s15, 1
      %s23 = ssub.s32 %s15, %s22
      %p24 = scmp.eq.s32.totalorder %s23, 0
      %s26 = sadd.s32 %s25, 1
      %s27 = scalar_select %p24, %s25, %s26
      %p30 = pneg %p24
      %p31 = scmp.eq.s32.totalorder %s15, 1
      %p32 = por %p30, %p31
      %p33 = scmp.ne.s32.totalorder %s25, %s28
      %p34 = scmp.eq.s32.totalorder %s15, 0
      %p35 = por %p33, %p34
      %p36 = scmp.ne.s32.totalorder %s25, %s28
      %p37 = scmp.eq.s32.totalorder %s20, 1
      %p38 = por %p36, %p37
      %p39 = scmp.ne.s32.totalorder %s28, %s29
      %p40 = scmp.eq.s32.totalorder %s20, 0
      %p41 = por %p39, %p40
      %p42 = scmp.ne.s32.totalorder %s28, %s29
      %p43 = scmp.eq.s32.totalorder %s21, 1
      %p44 = por %p42, %p43
      %p46 = scmp.ne.s32.totalorder %s29, %s45
      %p47 = scmp.eq.s32.totalorder %s21, 0
      %p48 = por %p46, %p47
      %s50 = sadd.s32 %s49, 1
      %p53 = scmp.eq.s32.totalorder %s15, 1
      %p54 = scmp.ne.s32.totalorder %s49, %s51
      %p55 = scmp.eq.s32.totalorder %s15, 0
      %p56 = por %p54, %p55
      %p57 = scmp.ne.s32.totalorder %s49, %s51
      %p58 = scmp.eq.s32.totalorder %s20, 1
      %p59 = por %p57, %p58
      %p60 = scmp.ne.s32.totalorder %s51, %s52
      %p61 = scmp.eq.s32.totalorder %s20, 0
      %p62 = por %p60, %p61
      %p63 = scmp.ne.s32.totalorder %s51, %s52
      %p64 = scmp.eq.s32.totalorder %s21, 1
      %p65 = por %p63, %p64
      %p67 = scmp.ne.s32.totalorder %s52, %s66
      %p68 = scmp.eq.s32.totalorder %s21, 0
      %p69 = por %p67, %p68
      %s70 = ssub.s32 %s15, %s22
      %p71 = scmp.eq.s32.totalorder %s70, 0
      %s73 = sadd.s32 %s72, 1
      %s74 = scalar_select %p71, %s72, %s73
      %p77 = pneg %p71
      %p78 = scmp.eq.s32.totalorder %s15, 1
      %p79 = por %p77, %p78
      %p80 = scmp.ne.s32.totalorder %s72, %s75
      %p81 = scmp.eq.s32.totalorder %s15, 0
      %p82 = por %p80, %p81
      %p83 = scmp.ne.s32.totalorder %s72, %s75
      %p84 = scmp.eq.s32.totalorder %s20, 1
      %p85 = por %p83, %p84
      %p86 = scmp.ne.s32.totalorder %s75, %s76
      %p87 = scmp.eq.s32.totalorder %s20, 0
      %p88 = por %p86, %p87
      %p89 = scmp.ne.s32.totalorder %s75, %s76
      %p90 = scmp.eq.s32.totalorder %s21, 1
      %p91 = por %p89, %p90
      %p93 = scmp.ne.s32.totalorder %s76, %s92
      %p94 = scmp.eq.s32.totalorder %s21, 0
      %p95 = por %p93, %p94
      %p96 = scmp.le.s32.totalorder 1, %s15
      %p97 = scmp.lt.s32.totalorder %s15, 3
      %p98 = pnand %p96, %p97
      %p99 = pneg %p98
      // Predicated region
      $region9: #{tpu_custom_call.1} parent=5 // pred_check
        _
      $region10: #{tpu_custom_call.1} parent=5 // pred_check_branch
        %101 = sbr.rel (%p98) target = $region12
      $region11: #{tpu_custom_call.1} parent=5 // pred_region
        %s102 = ssub.s32 %s15, 1
        // Predicated region
        $region13: #{tpu_custom_call.1} parent=11 // pred_check
          %p103 = pneg %p62
        $region14: #{tpu_custom_call.1} parent=11 // pred_check_branch
          %105 = sbr.rel (%p103) target = $region16
        $region15: #{tpu_custom_call.1} parent=11 // pred_region
          %s107 = ssub.s32 4096, 4096
          %108 = vsyncadd [#allocation6], %s107
          %s109 = sshll.u32 [#allocation5], 4
          %s110 = int_to_ptr.vmem [resolvable:$true] %s109
          %115 = dma.hbm_to_vmem [thread:$0]  %s1, 4096, %s110, [#allocation6], 128, 128, 8
        $region16: #{tpu_custom_call.1} parent=11 // pred_fallthru
          _
      $region12: #{tpu_custom_call.1} parent=5 // pred_fallthru
        _
      %p116 = scmp.lt.s32.totalorder %s15, 2
      // Predicated region
      $region17: #{tpu_custom_call.1} parent=5 // pred_check
        %p117 = pneg %p116
      $region18: #{tpu_custom_call.1} parent=5 // pred_check_branch
        %119 = sbr.rel (%p117) target = $region20
      $region19: #{tpu_custom_call.1} parent=5 // pred_region
        // Predicated region
        $region21: #{tpu_custom_call.1} parent=19 // pred_check
          %p120 = pneg %p35
        $region22: #{tpu_custom_call.1} parent=19 // pred_check_branch
          %122 = sbr.rel (%p120) target = $region24
        $region23: #{tpu_custom_call.1} parent=19 // pred_region
          %s123 = sand.u32 %s25, 1
          %s124 = scalar_lea.sflag [#allocation3], %s123
          %s125 = sand.u32 %s25, 1
          %s126 = smul.addr %s125, 128
          %s127 = scalar_lea.vmem [#allocation2], %s126
          %s128 = smul.u32 8, %s15
          %s130 = ssub.s32 2048, 2048
          %131 = vsyncadd %s124, %s130
          %s132 = smul.addr %s128, 2
          %s133 = smul.addr %s132, 128
          %s134 = scalar_lea.hbm %s0, %s133
          %s135 = sshll.u32 %s127, 4
          %s136 = int_to_ptr.vmem [resolvable:$true] %s135
          %141 = dma.hbm_to_vmem [thread:$0]  %s134, 2048, %s136, %s124, 256, 256, 16
        $region24: #{tpu_custom_call.1} parent=19 // pred_fallthru
          _
      $region20: #{tpu_custom_call.1} parent=5 // pred_fallthru
        _
      %p142 = scmp.le.s32.totalorder 1, %s15
      %p143 = scmp.lt.s32.totalorder %s15, 3
      %p144 = pnand %p142, %p143
      %p145 = pneg %p144
      // Predicated region
      $region25: #{tpu_custom_call.1} parent=5 // pred_check
        _
      $region26: #{tpu_custom_call.1} parent=5 // pred_check_branch
        %147 = sbr.rel (%p144) target = $region28
      $region27: #{tpu_custom_call.1} parent=5 // pred_region
        %s148 = ssub.s32 %s15, 1
        %s149 = sand.u32 %s28, 1
        %s150 = scalar_lea.sflag [#allocation3], %s149
        %s151 = sand.u32 %s28, 1
        %s152 = smul.addr %s151, 128
        %s153 = scalar_lea.vmem [#allocation2], %s152
        // Predicated region
        $region29: #{tpu_custom_call.1} parent=27 // pred_check
          %p154 = pneg %p41
        $region30: #{tpu_custom_call.1} parent=27 // pred_check_branch
          %156 = sbr.rel (%p154) target = $region32
        $region31: #{tpu_custom_call.1} parent=27 // pred_region
          %157 = dma.done %s150, 2048
        $region32: #{tpu_custom_call.1} parent=27 // pred_fallthru
          _
        // Predicated region
        $region33: #{tpu_custom_call.1} parent=27 // pred_check
          %p158 = pneg %p62
        $region34: #{tpu_custom_call.1} parent=27 // pred_check_branch
          %160 = sbr.rel (%p158) target = $region36
        $region35: #{tpu_custom_call.1} parent=27 // pred_region
          %161 = dma.done [#allocation6], 4096
        $region36: #{tpu_custom_call.1} parent=27 // pred_fallthru
          _
        %s162 = sand.u32 %s28, 1
        %s163 = scalar_lea.sflag [#allocation3], %s162
        %s164 = sand.u32 %s28, 1
        %s165 = smul.addr %s164, 128
        %s166 = scalar_lea.vmem [#allocation2], %s165
        %p167 = pneg %p41
        %p168 = pneg %p38
        %p169 = pneg %p62
        %p170 = pneg %p59
        %p171 = pneg %p88
        %p172 = pneg %p85
        %s173 = sand.u32 %s75, 1
        %s174 = scalar_lea.sflag [#allocation4], %s173
        %s175 = sand.u32 %s75, 1
        %s176 = smul.addr %s175, 64
        %s177 = scalar_lea.vmem [#allocation7], %s176
        %s178 = smul.u32 8, %s20
        %s179 = smul.u32 8, %s20
        %v180 = vld [vmem:[%s153] sm:$0xff]
        %v181 = vld [vmem:[%s153 + $0x8] sm:$0xff]
        %v182 = vld [vmem:[%s153 + $0x10] sm:$0xff]
        %v183 = vld [vmem:[%s153 + $0x18] sm:$0xff]
        %v184 = vld [vmem:[%s153 + $0x20] sm:$0xff]
        %v185 = vld [vmem:[%s153 + $0x28] sm:$0xff]
        %v186 = vld [vmem:[%s153 + $0x30] sm:$0xff]
        %v187 = vld [vmem:[%s153 + $0x38] sm:$0xff]
        %v188 = vld [vmem:[%s153 + $0x40] sm:$0xff]
        %v189 = vld [vmem:[%s153 + $0x48] sm:$0xff]
        %v190 = vld [vmem:[%s153 + $0x50] sm:$0xff]
        %v191 = vld [vmem:[%s153 + $0x58] sm:$0xff]
        %v192 = vld [vmem:[%s153 + $0x60] sm:$0xff]
        %v193 = vld [vmem:[%s153 + $0x68] sm:$0xff]
        %v194 = vld [vmem:[%s153 + $0x70] sm:$0xff]
        %v195 = vld [vmem:[%s153 + $0x78] sm:$0xff]
        %v196 = vld [vmem:[#allocation5] sm:$0xff]
        %v197 = vld [vmem:[#allocation5 + $0x8] sm:$0xff]
        %v198 = vld [vmem:[#allocation5 + $0x10] sm:$0xff]
        %v199 = vld [vmem:[#allocation5 + $0x18] sm:$0xff]
        %v200 = vld [vmem:[#allocation5 + $0x20] sm:$0xff]
        %v201 = vld [vmem:[#allocation5 + $0x28] sm:$0xff]
        %v202 = vld [vmem:[#allocation5 + $0x30] sm:$0xff]
        %v203 = vld [vmem:[#allocation5 + $0x38] sm:$0xff]
        %v204 = vld [vmem:[#allocation5 + $0x40] sm:$0xff]
        %v205 = vld [vmem:[#allocation5 + $0x48] sm:$0xff]
        %v206 = vld [vmem:[#allocation5 + $0x50] sm:$0xff]
        %v207 = vld [vmem:[#allocation5 + $0x58] sm:$0xff]
        %v208 = vld [vmem:[#allocation5 + $0x60] sm:$0xff]
        %v209 = vld [vmem:[#allocation5 + $0x68] sm:$0xff]
        %v210 = vld [vmem:[#allocation5 + $0x70] sm:$0xff]
        %v211 = vld [vmem:[#allocation5 + $0x78] sm:$0xff]
        %v212 = vld [vmem:[#allocation5 + $0x80] sm:$0xff]
        %v213 = vld [vmem:[#allocation5 + $0x88] sm:$0xff]
        %v214 = vld [vmem:[#allocation5 + $0x90] sm:$0xff]
        %v215 = vld [vmem:[#allocation5 + $0x98] sm:$0xff]
        %v216 = vld [vmem:[#allocation5 + $0xa0] sm:$0xff]
        %v217 = vld [vmem:[#allocation5 + $0xa8] sm:$0xff]
        %v218 = vld [vmem:[#allocation5 + $0xb0] sm:$0xff]
        %v219 = vld [vmem:[#allocation5 + $0xb8] sm:$0xff]
        %v220 = vld [vmem:[#allocation5 + $0xc0] sm:$0xff]
        %v221 = vld [vmem:[#allocation5 + $0xc8] sm:$0xff]
        %v222 = vld [vmem:[#allocation5 + $0xd0] sm:$0xff]
        %v223 = vld [vmem:[#allocation5 + $0xd8] sm:$0xff]
        %v224 = vld [vmem:[#allocation5 + $0xe0] sm:$0xff]
        %v225 = vld [vmem:[#allocation5 + $0xe8] sm:$0xff]
        %v226 = vld [vmem:[#allocation5 + $0xf0] sm:$0xff]
        %v227 = vld [vmem:[#allocation5 + $0xf8] sm:$0xff]
        %228 = vmatprep.subr.mxu0 0.0
        %229 = vmatpush1.msra.mxu0 %v196
        %230 = vmatprep.subr.mxu0 0.0
        %231 = vmatpush1.msra.mxu0 %v197
        %232 = vmatprep.subr.mxu0 0.0
        %233 = vmatpush1.msra.mxu0 %v198
        %234 = vmatprep.subr.mxu0 0.0
        %235 = vmatpush1.msra.mxu0 %v199
        %236 = vmatprep.subr.mxu0 0.0
        %237 = vmatpush1.msra.mxu0 %v200
        %238 = vmatprep.subr.mxu0 0.0
        %239 = vmatpush1.msra.mxu0 %v201
        %240 = vmatprep.subr.mxu0 0.0
        %241 = vmatpush1.msra.mxu0 %v202
        %242 = vmatprep.subr.mxu0 0.0
        %243 = vmatpush1.msra.mxu0 %v203
        %244 = vmatprep.subr.mxu0 0.0
        %245 = vmatpush1.msra.mxu0 %v204
        %246 = vmatprep.subr.mxu0 0.0
        %247 = vmatpush1.msra.mxu0 %v205
        %248 = vmatprep.subr.mxu0 0.0
        %249 = vmatpush1.msra.mxu0 %v206
        %250 = vmatprep.subr.mxu0 0.0
        %251 = vmatpush1.msra.mxu0 %v207
        %252 = vmatprep.subr.mxu0 0.0
        %253 = vmatpush1.msra.mxu0 %v208
        %254 = vmatprep.subr.mxu0 0.0
        %255 = vmatpush1.msra.mxu0 %v209
        %256 = vmatprep.subr.mxu0 0.0
        %257 = vmatpush1.msra.mxu0 %v210
        %258 = vmatprep.subr.mxu0 0.0
        %259 = vmatpush1.msra.mxu0 %v211
        %260 = vmatprep.subr.mxu0 0.0
        %261 = vmatpush1.msra.mxu0 %v212
        %262 = vmatprep.subr.mxu0 0.0
        %263 = vmatpush1.msra.mxu0 %v213
        %264 = vmatprep.subr.mxu0 0.0
        %265 = vmatpush1.msra.mxu0 %v214
        %266 = vmatprep.subr.mxu0 0.0
        %267 = vmatpush1.msra.mxu0 %v215
        %268 = vmatprep.subr.mxu0 0.0
        %269 = vmatpush1.msra.mxu0 %v216
        %270 = vmatprep.subr.mxu0 0.0
        %271 = vmatpush1.msra.mxu0 %v217
        %272 = vmatprep.subr.mxu0 0.0
        %273 = vmatpush1.msra.mxu0 %v218
        %274 = vmatprep.subr.mxu0 0.0
        %275 = vmatpush1.msra.mxu0 %v219
        %276 = vmatprep.subr.mxu0 0.0
        %277 = vmatpush1.msra.mxu0 %v220
        %278 = vmatprep.subr.mxu0 0.0
        %279 = vmatpush1.msra.mxu0 %v221
        %280 = vmatprep.subr.mxu0 0.0
        %281 = vmatpush1.msra.mxu0 %v222
        %282 = vmatprep.subr.mxu0 0.0
        %283 = vmatpush1.msra.mxu0 %v223
        %284 = vmatprep.subr.mxu0 0.0
        %285 = vmatpush1.msra.mxu0 %v224
        %286 = vmatprep.subr.mxu0 0.0
        %287 = vmatpush1.msra.mxu0 %v225
        %288 = vmatprep.subr.mxu0 0.0
        %289 = vmatpush1.msra.mxu0 %v226
        %290 = vmatprep.subr.mxu0 0.0
        %291 = vmatpush1.msra.mxu0 %v227
        %292 = vmatprep.mubr.f32.mxu0 %v181
        %293 = vmatmul.mubr.f32.gmra.mrb[0].mxu0 %v180
        %v294 = vpop.f32.mrb[0].mxu0
        %v295 = vadd.f32 0.0, %v294
        %v296 = vpop.f32.mrb[0].mxu0
        %297 = vmatprep.mubr.f32.mxu0 %v183
        %298 = vmatmul.mubr.f32.gmra.mrb[0].mxu0 %v182
        %v299 = vpop.f32.mrb[0].mxu0
        %v300 = vadd.f32 0.0, %v299
        %v301 = vpop.f32.mrb[0].mxu0
        %302 = vmatprep.mubr.f32.mxu0 %v185
        %303 = vmatmul.mubr.f32.gmra.mrb[0].mxu0 %v184
        %v304 = vpop.f32.mrb[0].mxu0
        %v305 = vadd.f32 0.0, %v304
        %v306 = vpop.f32.mrb[0].mxu0
        %307 = vmatprep.mubr.f32.mxu0 %v187
        %308 = vmatmul.mubr.f32.gmra.mrb[0].mxu0 %v186
        %v309 = vpop.f32.mrb[0].mxu0
        %v310 = vadd.f32 0.0, %v309
        %v311 = vpop.f32.mrb[0].mxu0
        %312 = vmatprep.mubr.f32.mxu0 %v189
        %313 = vmatmul.mubr.f32.gmra.mrb[0].mxu0 %v188
        %v314 = vpop.f32.mrb[0].mxu0
        %v315 = vadd.f32 0.0, %v314
        %v316 = vpop.f32.mrb[0].mxu0
        %317 = vmatprep.mubr.f32.mxu0 %v191
        %318 = vmatmul.mubr.f32.gmra.mrb[0].mxu0 %v190
        %v319 = vpop.f32.mrb[0].mxu0
        %v320 = vadd.f32 0.0, %v319
        %v321 = vpop.f32.mrb[0].mxu0
        %322 = vmatprep.mubr.f32.mxu0 %v193
        %323 = vmatmul.mubr.f32.gmra.mrb[0].mxu0 %v192
        %v324 = vpop.f32.mrb[0].mxu0
        %v325 = vadd.f32 0.0, %v324
        %v326 = vpop.f32.mrb[0].mxu0
        %327 = vmatprep.mubr.f32.mxu0 %v195
        %328 = vmatmul.mubr.f32.gmra.mrb[0].mxu0 %v194
        %v329 = vpop.f32.mrb[0].mxu0
        %v330 = vadd.f32 0.0, %v329
        %v331 = vpop.f32.mrb[0].mxu0
        %332 = vdwg.mxu0
        %333 = vst [vmem:[%s177] sm:$0xff] %v295
        %334 = vst [vmem:[%s177 + $0x8] sm:$0xff] %v300
        %335 = vst [vmem:[%s177 + $0x10] sm:$0xff] %v305
        %336 = vst [vmem:[%s177 + $0x18] sm:$0xff] %v310
        %337 = vst [vmem:[%s177 + $0x20] sm:$0xff] %v315
        %338 = vst [vmem:[%s177 + $0x28] sm:$0xff] %v320
        %339 = vst [vmem:[%s177 + $0x30] sm:$0xff] %v325
        %340 = vst [vmem:[%s177 + $0x38] sm:$0xff] %v330
        %s341 = sand.u32 %s75, 1
        %s342 = scalar_lea.sflag [#allocation4], %s341
        %s343 = sand.u32 %s75, 1
        %s344 = smul.addr %s343, 64
        %s345 = scalar_lea.vmem [#allocation7], %s344
        // Predicated region
        $region37: #{tpu_custom_call.1} parent=27 // pred_check
          %p346 = pneg %p85
        $region38: #{tpu_custom_call.1} parent=27 // pred_check_branch
          %348 = sbr.rel (%p346) target = $region40
        $region39: #{tpu_custom_call.1} parent=27 // pred_region
          %s349 = smul.u32 8, %s20
          %s351 = ssub.s32 1024, 1024
          %352 = vsyncadd %s342, %s351
          %s353 = smul.addr %s349, 128
          %s354 = scalar_lea.hbm %s2, %s353
          %s355 = sshll.u32 %s345, 4
          %s356 = int_to_ptr.vmem [resolvable:$true] %s355
          %361 = dma.vmem_to_hbm [thread:$0]  %s356, 1024, %s354, %s342, 128, 128, 8
        $region40: #{tpu_custom_call.1} parent=27 // pred_fallthru
          _
      $region28: #{tpu_custom_call.1} parent=5 // pred_fallthru
        _
      %p362 = scmp.le.s32.totalorder 2, %s15
      // Predicated region
      $region41: #{tpu_custom_call.1} parent=5 // pred_check
        %p363 = pneg %p362
      $region42: #{tpu_custom_call.1} parent=5 // pred_check_branch
        %365 = sbr.rel (%p363) target = $region44
      $region43: #{tpu_custom_call.1} parent=5 // pred_region
        %s366 = ssub.s32 %s15, 2
        // Predicated region
        $region45: #{tpu_custom_call.1} parent=43 // pred_check
          %p367 = pneg %p91
        $region46: #{tpu_custom_call.1} parent=43 // pred_check_branch
          %369 = sbr.rel (%p367) target = $region48
        $region47: #{tpu_custom_call.1} parent=43 // pred_region
          %s370 = sand.u32 %s76, 1
          %s371 = scalar_lea.sflag [#allocation4], %s370
          %s372 = sand.u32 %s76, 1
          %s373 = smul.addr %s372, 64
          %s374 = scalar_lea.vmem [#allocation7], %s373
          %375 = dma.done %s371, 1024
        $region48: #{tpu_custom_call.1} parent=43 // pred_fallthru
          _
      $region44: #{tpu_custom_call.1} parent=5 // pred_fallthru
        _
    $region6: #{tpu_custom_call.1} parent=1 // loop_footer
      %s19 = sadd.s32 1, %s15
    $region7: #{tpu_custom_call.1} parent=1 // loop_footer_branch
      %14 = sbr.rel target = $region3
    $region8: #{tpu_custom_call.1} parent=1 // loop_exit
      _
    %376 = vsyncpa [#allocation3], 1
    %s377 = scalar_lea.sflag [#allocation3], 1
    %378 = vsyncpa %s377, 1
    %379 = vsyncpa [#allocation6], 1
    %380 = vsyncpa [#allocation4], 1
    %s381 = scalar_lea.sflag [#allocation4], 1
    %382 = vsyncpa %s381, 1

</llo_original>
